<compile_context>
chip_gen: v5e
topology: v5e:2x2
jax: 0.10.0
libtpu: 0.0.40
codegen_flags: <defaults>
</compile_context>

<pallas_src>
import functools

import numpy as np
import jax
import jax.numpy as jnp
from jax import lax
from jax.experimental import pallas as pl
from jax.experimental.pallas import tpu as pltpu

_SUB = 8  # f32 sublane quantum


# ---------------------- pltpu.roll direction probe --------------------------
def _roll_probe_kernel(x_ref, o_ref):
    o_ref[...] = pltpu.roll(x_ref[...], 17, axis=1)


@functools.lru_cache(maxsize=None)
def _roll_matches_jnp():
    """True if pltpu.roll(x, s, axis) == jnp.roll(x, s, axis), else False.

    Probed once per process (cached) on a multi-vreg lane extent (8 x 256,
    shift 17) so the direction is validated on the same kind of lane roll the
    kernel performs (roll amounts up to W+1 across a >128-lane extent).
    """
    x = jnp.arange(8 * 256, dtype=jnp.float32).reshape(8, 256)
    y = pl.pallas_call(
        _roll_probe_kernel,
        out_shape=jax.ShapeDtypeStruct((8, 256), jnp.float32),
    )(x)
    y = np.asarray(jax.block_until_ready(y))
    xn = np.asarray(x)
    if np.array_equal(y, np.roll(xn, 17, axis=1)):
        return True
    if np.array_equal(y, np.roll(xn, -17, axis=1)):
        return False
    raise RuntimeError("pltpu.roll semantics probe gave an unexpected result")


# --------------------------- edge masks (host) -------------------------------
def build_tap_masks(H, W, reps):
    """(9, 1, reps*H*W) f32: 1 where the (dy,dx)-shifted neighbor is in-image.

    Tiled `reps` times along lanes.  Because every out-of-image neighbor is
    masked to zero, the same masks also kill cross-image contamination when
    several images share one lane axis, including the lane-roll wrap-around.
    """
    hh = np.arange(H).reshape(H, 1)
    ww = np.arange(W).reshape(1, W)
    masks = np.zeros((9, H, W), np.float32)
    for ky in range(3):
        for kx in range(3):
            dy, dx = ky - 1, kx - 1
            valid = ((hh + dy >= 0) & (hh + dy < H) &
                     (ww + dx >= 0) & (ww + dx < W))
            masks[ky * 3 + kx] = valid.astype(np.float32)
    m = masks.reshape(9, 1, H * W)
    return jnp.asarray(np.tile(m, (1, 1, reps)))


# ----------------------- host-side weight packing ----------------------------
def pack_fused_weights(w1_pt, b1_pt, w3_pt, b3_pt, wd_pt, bd_pt):
    """Pack the per-stage fused matmul weights (exact f32, numpy).

    Returns (wf, wd3):
      wf  : (3, 3C, K) f32 with K = 9*Cpad + 8.  For stage i the output rows
            are [conv3(t) ; conv1(t) ; Wd_i @ conv1(t)].  The 9 tap blocks sit
            at 8-aligned column slots matching the in-kernel tap scratch; the
            first column of the final slot multiplies the constant ones rows
            and carries all folded biases (b3, b1, Wd_i@b1, and bd in stage 0).
      wd3 : (C, C) f32, the only conv1_down block that cannot be pre-folded
            (its operand x6 passes through a ReLU).
    """
    w1 = np.asarray(w1_pt, np.float32)[:, :, 0, 0]                       # (C, C)
    b1 = np.asarray(b1_pt, np.float32)
    C = w1.shape[0]
    w3 = np.transpose(np.asarray(w3_pt, np.float32), (2, 3, 0, 1)).reshape(9, C, C)
    b3 = np.asarray(b3_pt, np.float32)
    wd = np.asarray(wd_pt, np.float32)[:, :, 0, 0]                       # (C, 4C)
    bd = np.asarray(bd_pt, np.float32)
    wd_blk = wd.reshape(C, 4, C).transpose(1, 0, 2)                      # (4, C, C)

    cpad = -(-C // _SUB) * _SUB
    K = 9 * cpad + _SUB
    ones_col = 9 * cpad

    wf = np.zeros((3, 3 * C, K), np.float32)
    for i in range(3):
        for k in range(9):
            wf[i, 0:C, k * cpad:k * cpad + C] = w3[k]                    # conv3 taps
        wf[i, 0:C, ones_col] = b3
        wf[i, C:2 * C, 4 * cpad:4 * cpad + C] = w1                       # conv1 (center tap)
        wf[i, C:2 * C, ones_col] = b1
        wf[i, 2 * C:3 * C, 4 * cpad:4 * cpad + C] = wd_blk[i] @ w1       # Wd_i @ conv1
        wf[i, 2 * C:3 * C, ones_col] = wd_blk[i] @ b1
    wf[0, 2 * C:3 * C, ones_col] += bd          # conv1_down bias folded once
    return jnp.asarray(wf), jnp.asarray(wd_blk[3])


# ----------------------------- Pallas forward --------------------------------
def ebfb_srb_forward(x_nchw, w1_pt, b1_pt, w3_pt, b3_pt, wd_pt, bd_pt,
                     images_per_step=None, use_bf16_dot=False):
    N, C, H, W = x_nchw.shape
    P = H * W

    if images_per_step is None:
        # Amortize the ~0.35us fixed cost per grid step, keep the lane extent
        # modest for VMEM, and keep >= 2 grid steps when possible so v7x's two
        # TensorCores both get work on the "parallel" axis.
        nb = min(N, max(1, 8192 // P))
        while nb > 1 and (N % nb != 0 or N // nb < 2):
            nb -= 1
        images_per_step = nb
    Nb = images_per_step
    assert N % Nb == 0, "images_per_step must divide the batch"
    G = N // Nb
    Q = Nb * P

    cpad = -(-C // _SUB) * _SUB
    K = 9 * cpad + _SUB
    ones_off = 9 * cpad

    wf, wd3 = pack_fused_weights(w1_pt, b1_pt, w3_pt, b3_pt, wd_pt, bd_pt)
    masks = build_tap_masks(H, W, Nb)                            # (9, 1, Q)

    # NCHW -> (G, C, Q): channels on sublanes, Nb flattened images on lanes.
    # (wrapper-side layout plumbing only; lane-dense loads/stores in-kernel)
    x_g = jnp.transpose(x_nchw.reshape(G, Nb, C, P), (0, 2, 1, 3)).reshape(G, C, Q)

    # Per-tap lane-roll amounts: shifted[c, p] = t[c, p + s] at masked-valid
    # positions, translated per the probed pltpu.roll direction.
    roll_like_jnp = _roll_matches_jnp()
    shifts = []
    for ky in range(3):
        for kx in range(3):
            s = (ky - 1) * W + (kx - 1)
            shifts.append((-s) % Q if roll_like_jnp else s % Q)

    def kernel(x_ref, m_ref, wf_ref, wd3_ref, o_ref, taps):
        # Per-step scratch init (unconditional: megacore-safe on v7x).  Zeroes
        # the sublane pad rows of every tap slot (so garbage never meets the
        # MXU) and writes the constant "ones" slot carrying the folded biases.
        taps[...] = jnp.zeros_like(taps)
        taps[ones_off:ones_off + _SUB, :] = jnp.ones((_SUB, Q), jnp.float32)

        X = x_ref[0]                                             # (C, Q)
        relu = lambda v: jnp.maximum(v, 0.0)

        def fused_stage(i, t):
            # Stage the 9 shifted+masked taps at 8-aligned sublane slots, then
            # one MXU push: rows = [conv3(t) ; conv1(t) ; Wd_i @ conv1(t)].
            for k in range(9):
                if shifts[k] == 0:                               # center tap
                    tap = t
                else:
                    tap = pltpu.roll(t, shifts[k], axis=1) * m_ref[k]
                taps[k * cpad:k * cpad + C, :] = tap
            lhs = wf_ref[i]
            rhs = taps[...]
            if use_bf16_dot:                                     # v6e/v7x knob; breaks 1e-4 tol
                lhs = lhs.astype(jnp.bfloat16)
                rhs = rhs.astype(jnp.bfloat16)
            return jnp.dot(lhs, rhs, preferred_element_type=jnp.float32)

        y0 = fused_stage(0, X)
        out1 = y0[C:2 * C] + relu(X + y0[0:C])                   # x1 + x2
        acc = y0[2 * C:3 * C]                                    # Wd_0@x1 + bd

        y1 = fused_stage(1, out1)
        out2 = y1[C:2 * C] + relu(out1 + y1[0:C])                # x3 + x4
        acc = acc + y1[2 * C:3 * C]                              # + Wd_1@x3

        y2 = fused_stage(2, out2)
        x6 = relu(out2 + y2[0:C])
        acc = acc + y2[2 * C:3 * C]                              # + Wd_2@x5

        # Only conv1_down branch that could not be pre-folded (ReLU-gated).
        lhs = wd3_ref[...]
        rhs = x6
        if use_bf16_dot:
            lhs = lhs.astype(jnp.bfloat16)
            rhs = rhs.astype(jnp.bfloat16)
        acc = acc + jnp.dot(lhs, rhs, preferred_element_type=jnp.float32)

        o_ref[0] = acc                                           # lane-dense (C, Q) store

    def full(a):
        return pl.BlockSpec(a.shape, lambda g: (0,) * a.ndim)

    out_g = pl.pallas_call(
        kernel,
        out_shape=jax.ShapeDtypeStruct((G, C, Q), jnp.float32),
        grid=(G,),
        in_specs=[
            pl.BlockSpec((1, C, Q), lambda g: (g, 0, 0)),        # x
            full(masks), full(wf), full(wd3),
        ],
        out_specs=pl.BlockSpec((1, C, Q), lambda g: (g, 0, 0)),
        scratch_shapes=[pltpu.VMEM((K, Q), jnp.float32)],        # stacked-tap RHS
        compiler_params=pltpu.CompilerParams(
            dimension_semantics=("parallel",)),
    )(x_g, masks, wf, wd3)

    return jnp.transpose(out_g.reshape(G, C, Nb, P),
                         (0, 2, 1, 3)).reshape(N, C, H, W)


# ------------------------- pure-JAX reference (NCHW) ------------------------
def ebfb_srb_ref(x, w1_pt, b1_pt, w3_pt, b3_pt, wd_pt, bd_pt):
    def conv(t, w, b, pad):
        y = lax.conv_general_dilated(
            t, w, window_strides=(1, 1), padding=[(pad, pad), (pad, pad)],
            dimension_numbers=("NCHW", "OIHW", "NCHW"))
        return y + b[None, :, None, None]

    c1 = lambda t: conv(t, w1_pt, b1_pt, 0)
    c3 = lambda t: conv(t, w3_pt, b3_pt, 1)
    relu = lambda t: jnp.maximum(t, 0.0)

    x1 = c1(x)
    x2 = relu(x + c3(x))
    out1 = x1 + x2
    x3 = c1(out1)
    x4 = relu(out1 + c3(out1))
    out2 = x3 + x4
    x5 = c1(out2)
    x6 = relu(out2 + c3(out2))
    cat = jnp.concatenate([x1, x3, x5, x6], axis=1)
    return conv(cat, wd_pt, bd_pt, 0)


# ---------------------------------- main -------------------------------------
if __name__ == "__main__":
    N, C, H, W = 2, 4, 16, 16

    key = jax.random.PRNGKey(0)
    ks = jax.random.split(key, 7)
    x = jax.random.normal(ks[0], (N, C, H, W), jnp.float32)

    # deterministic synthetic parameters (PyTorch conv weight layouts: OIHW)
    w3_pt = 0.1 * jax.random.normal(ks[1], (C, C, 3, 3), jnp.float32)
    b3_pt = 0.1 * jax.random.normal(ks[2], (C,), jnp.float32)
    w1_pt = 0.1 * jax.random.normal(ks[3], (C, C, 1, 1), jnp.float32)
    b1_pt = 0.1 * jax.random.normal(ks[4], (C,), jnp.float32)
    wd_pt = 0.1 * jax.random.normal(ks[5], (C, 4 * C, 1, 1), jnp.float32)
    bd_pt = 0.1 * jax.random.normal(ks[6], (C,), jnp.float32)

    out = ebfb_srb_forward(x, w1_pt, b1_pt, w3_pt, b3_pt, wd_pt, bd_pt)
    out = jax.block_until_ready(out)

    ref = ebfb_srb_ref(x, w1_pt, b1_pt, w3_pt, b3_pt, wd_pt, bd_pt)
    ref = jax.block_until_ready(ref)

    np.testing.assert_allclose(np.asarray(out), np.asarray(ref),
                               rtol=1e-4, atol=1e-4)
    print("KERNEL_OK")
</pallas_src>

<mosaic_0001>
module attributes {stable_mosaic.version = 11 : i64} {
  func.func @_roll_probe_kernel(%arg0: memref<8x256xf32, #tpu.memory_space<vmem>>, %arg1: memref<8x256xf32, #tpu.memory_space<vmem>>) attributes {dimension_semantics = [], scalar_prefetch = 0 : i64, scratch_operands = 0 : i64, tpu.core_type = #tpu.core_type<tc>} {
    %c0 = arith.constant 0 : index
    %c0_0 = arith.constant 0 : index
    %0 = vector.load %arg0[%c0, %c0_0] : memref<8x256xf32, #tpu.memory_space<vmem>>, vector<8x256xf32>
    %c17_i32 = arith.constant 17 : i32
    %1 = tpu.dynamic_rotate %0 by %c17_i32 dim 1 : vector<8x256xf32>, i32 -> vector<8x256xf32>
    %c0_1 = arith.constant 0 : index
    %c0_2 = arith.constant 0 : index
    %2 = vector.load %arg1[%c0_1, %c0_2] : memref<8x256xf32, #tpu.memory_space<vmem>>, vector<8x256xf32>
    tpu.vector_store %arg1[%c0_1, %c0_2], %1 {strides = array<i32>} : memref<8x256xf32, #tpu.memory_space<vmem>>, vector<8x256xf32>,
    return
  }
}

</mosaic_0001>

<llo_original>
// kernel: tpu_custom_call.1
$region0: #{tpu_custom_call.1}
  #allocation0 [shape = 'u32[]', space=smem, size = 0x4, offset = 0x4, fixed_abs, tag = 'smem constant byte address 0x4 - core index']
  #allocation1 [shape = 'u32[72,128]{1,0:T(1,128)}', space=vmem, size = 0x9000, scoped, tag = 'internal scratch']
  %s0 = inlined_call_operand.hbm [shape: f32[8,256], index: 0, kind: input, shape index: {}]
  %s1 = inlined_call_operand.hbm [shape: f32[8,256], index: 1, kind: output, shape index: {}]
  %s2 = sld [smem:[#allocation0]]
  $region18: #{tpu_custom_call.1} parent=0
    _
  %s4 = ssub.s32 1, %s2
  %s5 = scalar_select 0, %s4, %s2
  $region1: #{tpu_custom_call.1} parent=0
    #allocation2 [shape = 'u8[8192]{0}', space=vmem, size = 0x2000, scoped, tag = 'input window, operand 0, single buffered']
    #allocation3 [shape = 's32[1]{0}', space=sflag, size = 0x4, scoped, tag = 'scoped memory for tpu_custom_call.1']
    #allocation4 [shape = 's32[1]{0}', space=sflag, size = 0x4, scoped, tag = 'scoped memory for tpu_custom_call.1']
    #allocation5 [shape = 'u8[8192]{0}', space=vmem, size = 0x2000, scoped, tag = 'output window, operand 0, single buffered']
    %6 = vsyncpa [#allocation3], 0
    %7 = vsyncpa [#allocation4], 0
    // Predicated region
    $region2: #{tpu_custom_call.1} parent=1 // pred_check
      _
    $region3: #{tpu_custom_call.1} parent=1 // pred_check_branch
      %9 = sbr.rel (0) target = $region5
    $region4: #{tpu_custom_call.1} parent=1 // pred_region
      %11 = vsyncadd [#allocation3], 0
      %s13 = sshll.u32 %s0, 4
      %s14 = int_to_ptr.hbm [resolvable:$true] %s13
      %s15 = sshll.u32 [#allocation2], 4
      %s16 = int_to_ptr.vmem [resolvable:$true] %s15
      %18 = dma.hbm_to_vmem [thread:$0]  %s14, 256, %s16, [#allocation3]
    $region5: #{tpu_custom_call.1} parent=1 // pred_fallthru
      _
    // Predicated region
    $region6: #{tpu_custom_call.1} parent=1 // pred_check
      _
    $region7: #{tpu_custom_call.1} parent=1 // pred_check_branch
      %20 = sbr.rel (0) target = $region9
    $region8: #{tpu_custom_call.1} parent=1 // pred_region
      %22 = dma.done [#allocation3], 256
    $region9: #{tpu_custom_call.1} parent=1 // pred_fallthru
      _
    %v23 = vld [vmem:[#allocation2] sm:$0xff]
    %v24 = vld [vmem:[#allocation2 + $0x8] sm:$0xff]
    %25 = vrot.lane.b32.xlu0 %v23, 17
    %v26 = vpop.permute.xlu0 %25
    %27 = vrot.lane.b32.xlu0 %v24, 17
    %v28 = vpop.permute.xlu0 %27
    %v29 = vlaneseq
    %v30 = vand.u32 %v29, 127
    %vm31 = vcmp.lt.s32.totalorder %v30, 17
    %v32 = vsel %vm31, %v26, %v28
    %v33 = vsel %vm31, %v28, %v26
    %34 = vst [vmem:[#allocation5] sm:$0xff] %v33
    %35 = vst [vmem:[#allocation5 + $0x8] sm:$0xff] %v32
    // Predicated region
    $region10: #{tpu_custom_call.1} parent=1 // pred_check
      _
    $region11: #{tpu_custom_call.1} parent=1 // pred_check_branch
      %37 = sbr.rel (0) target = $region13
    $region12: #{tpu_custom_call.1} parent=1 // pred_region
      %39 = vsyncadd [#allocation4], 0
      %s41 = sshll.u32 [#allocation5], 4
      %s42 = int_to_ptr.vmem [resolvable:$true] %s41
      %s43 = sshll.u32 %s1, 4
      %s44 = int_to_ptr.hbm [resolvable:$true] %s43
      %46 = dma.vmem_to_hbm [thread:$0]  %s42, 256, %s44, [#allocation4]
    $region13: #{tpu_custom_call.1} parent=1 // pred_fallthru
      _
    // Predicated region
    $region14: #{tpu_custom_call.1} parent=1 // pred_check
      _
    $region15: #{tpu_custom_call.1} parent=1 // pred_check_branch
      %48 = sbr.rel (0) target = $region17
    $region16: #{tpu_custom_call.1} parent=1 // pred_region
      %50 = dma.done [#allocation4], 256
    $region17: #{tpu_custom_call.1} parent=1 // pred_fallthru
      _
    %51 = vsyncpa [#allocation3], 1
    %52 = vsyncpa [#allocation4], 1

</llo_original>
